<compile_context>
chip_gen: v6e
topology: v6e:2x2x1
jax: 0.10.0
libtpu: 0.0.40
codegen_flags: <defaults>
</compile_context>

<pallas_src>
import jax
import jax.numpy as jnp
from jax.experimental import pallas as pl
from jax.experimental.pallas import tpu as pltpu

COLOR_SIZE = 15
HIDDEN_DIM = 150
CURR_DIM = COLOR_SIZE + HIDDEN_DIM          # 165
D1 = CURR_DIM // 2                          # 82
D2 = CURR_DIM // 4                          # 41
D3 = CURR_DIM // 8                          # 20
D4 = 1

# Default max batch tile: multiple of 8; double-buffered inputs + lane-padded
# f32 activations stay ~10-12 MiB, i.e. under v5e's 16 MiB scoped default and
# far under v7x's 64 MiB physical VMEM, while still amortizing the ~0.35 us
# per-grid-step overhead (>1 MiB of HBM traffic per step).
_TILE_B_MAX = 2048


def _round_up(x, m):
    return ((x + m - 1) // m) * m


def _disc_kernel(color_ref, text_ref,
                 w1c_ref, w1t_ref, b1_ref,
                 w2_ref, b2_ref,
                 w3_ref, b3_ref,
                 w4_ref, b4_ref,
                 out_ref):
    # Layer 1: fused concat + linear + ReLU (concat folded into split-W1 dots).
    h = jnp.dot(color_ref[...], w1c_ref[...], preferred_element_type=jnp.float32)
    h = h + jnp.dot(text_ref[...], w1t_ref[...], preferred_element_type=jnp.float32)
    h = jnp.maximum(h + b1_ref[...], 0.0)
    # Layer 2
    h = jnp.dot(h, w2_ref[...], preferred_element_type=jnp.float32) + b2_ref[...]
    h = jnp.maximum(h, 0.0)
    # Layer 3
    h = jnp.dot(h, w3_ref[...], preferred_element_type=jnp.float32) + b3_ref[...]
    h = jnp.maximum(h, 0.0)
    # Layer 4 (20 -> 1): N=1 MXU matmul is wasteful; do it on the VPU (mul) +
    # XLU (cross-lane reduce). w4_ref is the (1, 20) row of the weight.
    logit = jnp.sum(h * w4_ref[...], axis=-1, keepdims=True) + b4_ref[...]
    # Sigmoid (exp on the EUP slot); exact f32 form to match the reference.
    out_ref[...] = 1.0 / (1.0 + jnp.exp(-logit))


def init_params(key):
    """Deterministic PyTorch-style init: U(-1/sqrt(fan_in), 1/sqrt(fan_in)).

    Weights are stored pre-transposed to (in_features, out_features), W1 is
    pre-split into its color/text row blocks, and W4 is stored as a (1, 20)
    row — all so the forward path does zero per-call weight reshuffling.
    """
    dims = [(CURR_DIM, D1), (D1, D2), (D2, D3), (D3, D4)]
    keys = jax.random.split(key, 2 * len(dims))
    raw = []
    for i, (fi, fo) in enumerate(dims):
        bound = 1.0 / (fi ** 0.5)
        w = jax.random.uniform(keys[2 * i], (fi, fo), jnp.float32, -bound, bound)
        b = jax.random.uniform(keys[2 * i + 1], (1, fo), jnp.float32, -bound, bound)
        raw.append((w, b))
    (w1, b1), (w2, b2), (w3, b3), (w4, b4) = raw
    return {
        "w1c": w1[:COLOR_SIZE, :],      # (15, 82)
        "w1t": w1[COLOR_SIZE:, :],      # (150, 82)
        "b1": b1,                       # (1, 82)
        "w2": w2, "b2": b2,             # (82, 41), (1, 41)
        "w3": w3, "b3": b3,             # (41, 20), (1, 20)
        "w4_row": w4.T,                 # (1, 20)
        "b4": b4,                       # (1, 1)
    }


def discriminator_forward(params, color, text, *, tile_b_max=_TILE_B_MAX):
    """color: (B, 15) f32, text: (B, 150) f32 -> (B,) f32"""
    B = color.shape[0]
    color = color.astype(jnp.float32)
    text = text.astype(jnp.float32)

    # Batch tile: multiple of 8, capped at tile_b_max.
    tile_b = min(_round_up(B, 8), _round_up(tile_b_max, 8))
    num_tiles = pl.cdiv(B, tile_b)
    b_padded = num_tiles * tile_b
    if b_padded != B:
        pad = b_padded - B
        color = jnp.pad(color, ((0, pad), (0, 0)))
        text = jnp.pad(text, ((0, pad), (0, 0)))

    batch_spec = lambda last: pl.BlockSpec((tile_b, last), lambda i: (i, 0))
    const_spec = lambda r, c: pl.BlockSpec((r, c), lambda i: (0, 0))

    in_specs = [
        batch_spec(COLOR_SIZE),            # color tile
        batch_spec(HIDDEN_DIM),            # text tile
        const_spec(COLOR_SIZE, D1),        # w1c (resident)
        const_spec(HIDDEN_DIM, D1),        # w1t (resident)
        const_spec(1, D1),                 # b1
        const_spec(D1, D2),                # w2
        const_spec(1, D2),                 # b2
        const_spec(D2, D3),                # w3
        const_spec(1, D3),                 # b3
        const_spec(1, D3),                 # w4 row
        const_spec(1, 1),                  # b4
    ]

    out = pl.pallas_call(
        _disc_kernel,
        out_shape=jax.ShapeDtypeStruct((b_padded, D4), jnp.float32),
        grid=(num_tiles,),
        in_specs=in_specs,
        out_specs=pl.BlockSpec((tile_b, D4), lambda i: (i, 0)),
        compiler_params=pltpu.CompilerParams(
            dimension_semantics=("parallel",),       # megacore on v7x
            vmem_limit_bytes=32 * 1024 * 1024,       # lift v5e's 16 MiB default
        ),
    )(color, text,
      params["w1c"], params["w1t"], params["b1"],
      params["w2"], params["b2"],
      params["w3"], params["b3"],
      params["w4_row"], params["b4"])

    return out[:B, 0]   # drop padded rows + squeeze(1)


def reference_forward(params, color, text):
    w1 = jnp.concatenate([params["w1c"], params["w1t"]], axis=0)
    x = jnp.concatenate([color, text], axis=1)
    h = jnp.maximum(x @ w1 + params["b1"], 0.0)
    h = jnp.maximum(h @ params["w2"] + params["b2"], 0.0)
    h = jnp.maximum(h @ params["w3"] + params["b3"], 0.0)
    logit = h @ params["w4_row"].T + params["b4"]
    return jax.nn.sigmoid(logit)[:, 0]


if __name__ == "__main__":
    key = jax.random.PRNGKey(0)
    kp, kc, kt = jax.random.split(key, 3)

    B = 8
    params = init_params(kp)
    color = jax.random.normal(kc, (B, COLOR_SIZE), jnp.float32)
    text = jax.random.normal(kt, (B, HIDDEN_DIM), jnp.float32)

    out = jax.block_until_ready(discriminator_forward(params, color, text))
    ref = reference_forward(params, color, text)
    assert out.shape == (B,), out.shape
    assert jnp.allclose(out, ref, atol=1e-5, rtol=1e-5), (out, ref)

    # Exercise the multi-tile grid + remainder-padding path at small shape.
    B2 = 20
    kc2, kt2 = jax.random.split(kt)
    color2 = jax.random.normal(kc2, (B2, COLOR_SIZE), jnp.float32)
    text2 = jax.random.normal(kt2, (B2, HIDDEN_DIM), jnp.float32)
    out2 = jax.block_until_ready(
        discriminator_forward(params, color2, text2, tile_b_max=8))
    ref2 = reference_forward(params, color2, text2)
    assert out2.shape == (B2,), out2.shape
    assert jnp.allclose(out2, ref2, atol=1e-5, rtol=1e-5), (out2, ref2)

    print("KERNEL_OK")
</pallas_src>

<mosaic_0001>
module attributes {stable_mosaic.version = 11 : i64} {
  func.func @_disc_kernel(%arg0: i32, %arg1: memref<8x15xf32, #tpu.memory_space<vmem>>, %arg2: memref<8x150xf32, #tpu.memory_space<vmem>>, %arg3: memref<15x82xf32, #tpu.memory_space<vmem>>, %arg4: memref<150x82xf32, #tpu.memory_space<vmem>>, %arg5: memref<1x82xf32, #tpu.memory_space<vmem>>, %arg6: memref<82x41xf32, #tpu.memory_space<vmem>>, %arg7: memref<1x41xf32, #tpu.memory_space<vmem>>, %arg8: memref<41x20xf32, #tpu.memory_space<vmem>>, %arg9: memref<1x20xf32, #tpu.memory_space<vmem>>, %arg10: memref<1x20xf32, #tpu.memory_space<vmem>>, %arg11: memref<1x1xf32, #tpu.memory_space<vmem>>, %arg12: memref<8x1xf32, #tpu.memory_space<vmem>>) attributes {dimension_semantics = [#tpu.dimension_semantics<parallel>], iteration_bounds = array<i64: 1>, scalar_prefetch = 0 : i64, scratch_operands = 0 : i64, tpu.core_type = #tpu.core_type<tc>, window_params = [{transform_indices = @transform_0, window_bounds = array<i64: 8, 15>}, {transform_indices = @transform_1, window_bounds = array<i64: 8, 150>}, {pipeline_mode = #tpu.pipeline_mode<synchronous>, transform_indices = @transform_2, window_bounds = array<i64: 15, 82>}, {pipeline_mode = #tpu.pipeline_mode<synchronous>, transform_indices = @transform_3, window_bounds = array<i64: 150, 82>}, {pipeline_mode = #tpu.pipeline_mode<synchronous>, transform_indices = @transform_4, window_bounds = array<i64: 1, 82>}, {pipeline_mode = #tpu.pipeline_mode<synchronous>, transform_indices = @transform_5, window_bounds = array<i64: 82, 41>}, {pipeline_mode = #tpu.pipeline_mode<synchronous>, transform_indices = @transform_6, window_bounds = array<i64: 1, 41>}, {pipeline_mode = #tpu.pipeline_mode<synchronous>, transform_indices = @transform_7, window_bounds = array<i64: 41, 20>}, {pipeline_mode = #tpu.pipeline_mode<synchronous>, transform_indices = @transform_8, window_bounds = array<i64: 1, 20>}, {pipeline_mode = #tpu.pipeline_mode<synchronous>, transform_indices = @transform_9, window_bounds = array<i64: 1, 20>}, {pipeline_mode = #tpu.pipeline_mode<synchronous>, transform_indices = @transform_10, window_bounds = array<i64: 1, 1>}, {transform_indices = @transform_11, window_bounds = array<i64: 8, 1>}]} {
    %c0 = arith.constant 0 : index
    %c0_0 = arith.constant 0 : index
    %0 = vector.load %arg1[%c0, %c0_0] : memref<8x15xf32, #tpu.memory_space<vmem>>, vector<8x15xf32>
    %c0_1 = arith.constant 0 : index
    %c0_2 = arith.constant 0 : index
    %1 = vector.load %arg3[%c0_1, %c0_2] : memref<15x82xf32, #tpu.memory_space<vmem>>, vector<15x82xf32>
    %cst = arith.constant dense<0.000000e+00> : vector<8x82xf32>
    %2 = tpu.matmul %0, %1, %cst {dimension_numbers = #tpu.dot_dimension_numbers<[1], [0], [0], [1], [0, 0, 1, 1], [], []>} : vector<8x15xf32>, vector<15x82xf32>, vector<8x82xf32> -> vector<8x82xf32>
    %c0_3 = arith.constant 0 : index
    %c0_4 = arith.constant 0 : index
    %3 = vector.load %arg2[%c0_3, %c0_4] : memref<8x150xf32, #tpu.memory_space<vmem>>, vector<8x150xf32>
    %c0_5 = arith.constant 0 : index
    %c0_6 = arith.constant 0 : index
    %4 = vector.load %arg4[%c0_5, %c0_6] : memref<150x82xf32, #tpu.memory_space<vmem>>, vector<150x82xf32>
    %cst_7 = arith.constant dense<0.000000e+00> : vector<8x82xf32>
    %5 = tpu.matmul %3, %4, %cst_7 {dimension_numbers = #tpu.dot_dimension_numbers<[1], [0], [0], [1], [0, 0, 1, 1], [], []>} : vector<8x150xf32>, vector<150x82xf32>, vector<8x82xf32> -> vector<8x82xf32>
    %6 = arith.addf %2, %5 : vector<8x82xf32>
    %c0_8 = arith.constant 0 : index
    %c0_9 = arith.constant 0 : index
    %7 = vector.load %arg5[%c0_8, %c0_9] : memref<1x82xf32, #tpu.memory_space<vmem>>, vector<1x82xf32>
    %8 = vector.broadcast %7 : vector<1x82xf32> to vector<8x82xf32>
    %9 = arith.addf %6, %8 : vector<8x82xf32>
    %cst_10 = arith.constant 0.000000e+00 : f32
    %10 = vector.broadcast %cst_10 : f32 to vector<8x82xf32>
    %11 = arith.maximumf %9, %10 : vector<8x82xf32>
    %c0_11 = arith.constant 0 : index
    %c0_12 = arith.constant 0 : index
    %12 = vector.load %arg6[%c0_11, %c0_12] : memref<82x41xf32, #tpu.memory_space<vmem>>, vector<82x41xf32>
    %cst_13 = arith.constant dense<0.000000e+00> : vector<8x41xf32>
    %13 = tpu.matmul %11, %12, %cst_13 {dimension_numbers = #tpu.dot_dimension_numbers<[1], [0], [0], [1], [0, 0, 1, 1], [], []>} : vector<8x82xf32>, vector<82x41xf32>, vector<8x41xf32> -> vector<8x41xf32>
    %c0_14 = arith.constant 0 : index
    %c0_15 = arith.constant 0 : index
    %14 = vector.load %arg7[%c0_14, %c0_15] : memref<1x41xf32, #tpu.memory_space<vmem>>, vector<1x41xf32>
    %15 = vector.broadcast %14 : vector<1x41xf32> to vector<8x41xf32>
    %16 = arith.addf %13, %15 : vector<8x41xf32>
    %cst_16 = arith.constant 0.000000e+00 : f32
    %17 = vector.broadcast %cst_16 : f32 to vector<8x41xf32>
    %18 = arith.maximumf %16, %17 : vector<8x41xf32>
    %c0_17 = arith.constant 0 : index
    %c0_18 = arith.constant 0 : index
    %19 = vector.load %arg8[%c0_17, %c0_18] : memref<41x20xf32, #tpu.memory_space<vmem>>, vector<41x20xf32>
    %cst_19 = arith.constant dense<0.000000e+00> : vector<8x20xf32>
    %20 = tpu.matmul %18, %19, %cst_19 {dimension_numbers = #tpu.dot_dimension_numbers<[1], [0], [0], [1], [0, 0, 1, 1], [], []>} : vector<8x41xf32>, vector<41x20xf32>, vector<8x20xf32> -> vector<8x20xf32>
    %c0_20 = arith.constant 0 : index
    %c0_21 = arith.constant 0 : index
    %21 = vector.load %arg9[%c0_20, %c0_21] : memref<1x20xf32, #tpu.memory_space<vmem>>, vector<1x20xf32>
    %22 = vector.broadcast %21 : vector<1x20xf32> to vector<8x20xf32>
    %23 = arith.addf %20, %22 : vector<8x20xf32>
    %cst_22 = arith.constant 0.000000e+00 : f32
    %24 = vector.broadcast %cst_22 : f32 to vector<8x20xf32>
    %25 = arith.maximumf %23, %24 : vector<8x20xf32>
    %c0_23 = arith.constant 0 : index
    %c0_24 = arith.constant 0 : index
    %26 = vector.load %arg10[%c0_23, %c0_24] : memref<1x20xf32, #tpu.memory_space<vmem>>, vector<1x20xf32>
    %27 = vector.broadcast %26 : vector<1x20xf32> to vector<8x20xf32>
    %28 = arith.mulf %25, %27 : vector<8x20xf32>
    %cst_25 = arith.constant dense<0.000000e+00> : vector<8xf32>
    %29 = vector.multi_reduction <add>, %28, %cst_25 [1] : vector<8x20xf32> to vector<8xf32>
    %30 = vector.shape_cast %29 : vector<8xf32> to vector<8x1xf32>
    %c0_26 = arith.constant 0 : index
    %c0_27 = arith.constant 0 : index
    %31 = vector.load %arg11[%c0_26, %c0_27] : memref<1x1xf32, #tpu.memory_space<vmem>>, vector<1x1xf32>
    %32 = vector.broadcast %31 : vector<1x1xf32> to vector<8x1xf32>
    %33 = arith.addf %30, %32 : vector<8x1xf32>
    %cst_28 = arith.constant 0.000000e+00 : f32
    %34 = vector.broadcast %cst_28 : f32 to vector<8x1xf32>
    %35 = arith.subf %34, %33 : vector<8x1xf32>
    %36 = math.exp %35 : vector<8x1xf32>
    %cst_29 = arith.constant 1.000000e+00 : f32
    %37 = vector.broadcast %cst_29 : f32 to vector<8x1xf32>
    %38 = arith.addf %37, %36 : vector<8x1xf32>
    %cst_30 = arith.constant 1.000000e+00 : f32
    %39 = vector.broadcast %cst_30 : f32 to vector<8x1xf32>
    %40 = arith.divf %39, %38 : vector<8x1xf32>
    %c0_31 = arith.constant 0 : index
    %c0_32 = arith.constant 0 : index
    %41 = vector.load %arg12[%c0_31, %c0_32] : memref<8x1xf32, #tpu.memory_space<vmem>>, vector<8x1xf32>
    tpu.vector_store %arg12[%c0_31, %c0_32], %40 {strides = array<i32>} : memref<8x1xf32, #tpu.memory_space<vmem>>, vector<8x1xf32>,
    return
  }
  func.func @transform_0(%arg0: i32) -> (i32, i32) {
    %c0_i32 = arith.constant 0 : i32
    %c0_i32_0 = arith.constant 0 : i32
    return %arg0, %c0_i32 : i32, i32
  }
  func.func @transform_1(%arg0: i32) -> (i32, i32) {
    %c0_i32 = arith.constant 0 : i32
    %c0_i32_0 = arith.constant 0 : i32
    return %arg0, %c0_i32 : i32, i32
  }
  func.func @transform_2(%arg0: i32) -> (i32, i32) {
    %c0_i32 = arith.constant 0 : i32
    %c0_i32_0 = arith.constant 0 : i32
    %c0_i32_1 = arith.constant 0 : i32
    return %c0_i32, %c0_i32_0 : i32, i32
  }
  func.func @transform_3(%arg0: i32) -> (i32, i32) {
    %c0_i32 = arith.constant 0 : i32
    %c0_i32_0 = arith.constant 0 : i32
    %c0_i32_1 = arith.constant 0 : i32
    return %c0_i32, %c0_i32_0 : i32, i32
  }
  func.func @transform_4(%arg0: i32) -> (i32, i32) {
    %c0_i32 = arith.constant 0 : i32
    %c0_i32_0 = arith.constant 0 : i32
    %c0_i32_1 = arith.constant 0 : i32
    return %c0_i32, %c0_i32_0 : i32, i32
  }
  func.func @transform_5(%arg0: i32) -> (i32, i32) {
    %c0_i32 = arith.constant 0 : i32
    %c0_i32_0 = arith.constant 0 : i32
    %c0_i32_1 = arith.constant 0 : i32
    return %c0_i32, %c0_i32_0 : i32, i32
  }
  func.func @transform_6(%arg0: i32) -> (i32, i32) {
    %c0_i32 = arith.constant 0 : i32
    %c0_i32_0 = arith.constant 0 : i32
    %c0_i32_1 = arith.constant 0 : i32
    return %c0_i32, %c0_i32_0 : i32, i32
  }
  func.func @transform_7(%arg0: i32) -> (i32, i32) {
    %c0_i32 = arith.constant 0 : i32
    %c0_i32_0 = arith.constant 0 : i32
    %c0_i32_1 = arith.constant 0 : i32
    return %c0_i32, %c0_i32_0 : i32, i32
  }
  func.func @transform_8(%arg0: i32) -> (i32, i32) {
    %c0_i32 = arith.constant 0 : i32
    %c0_i32_0 = arith.constant 0 : i32
    %c0_i32_1 = arith.constant 0 : i32
    return %c0_i32, %c0_i32_0 : i32, i32
  }
  func.func @transform_9(%arg0: i32) -> (i32, i32) {
    %c0_i32 = arith.constant 0 : i32
    %c0_i32_0 = arith.constant 0 : i32
    %c0_i32_1 = arith.constant 0 : i32
    return %c0_i32, %c0_i32_0 : i32, i32
  }
  func.func @transform_10(%arg0: i32) -> (i32, i32) {
    %c0_i32 = arith.constant 0 : i32
    %c0_i32_0 = arith.constant 0 : i32
    %c0_i32_1 = arith.constant 0 : i32
    return %c0_i32, %c0_i32_0 : i32, i32
  }
  func.func @transform_11(%arg0: i32) -> (i32, i32) {
    %c0_i32 = arith.constant 0 : i32
    %c0_i32_0 = arith.constant 0 : i32
    return %arg0, %c0_i32 : i32, i32
  }
}

</mosaic_0001>

<llo_original>
// kernel: tpu_custom_call.1
$region0: #{tpu_custom_call.1}
  #allocation0 [shape = 'u32[]', space=smem, size = 0x4, offset = 0x4, fixed_abs, tag = 'smem constant byte address 0x4 - core index']
  #allocation1 [shape = 'u32[144,128]{1,0:T(1,128)}', space=vmem, size = 0x12000, scoped, tag = 'internal scratch']
  #allocation2 [shape = 'f32[1,1]{1,0:T(1,128)S(1)}', space=vmem, size = 0x200, scoped, tag = 'scoped memory for tpu_custom_call.1']
  %s0 = inlined_call_operand.hbm [shape: f32[8,15], index: 0, kind: input, shape index: {}]
  %s1 = inlined_call_operand.vmem [shape: f32[8,150], index: 1, kind: input, shape index: {}]
  %s2 = inlined_call_operand.hbm [shape: f32[15,82], index: 2, kind: input, shape index: {}]
  %s3 = inlined_call_operand.vmem [shape: f32[150,82], index: 3, kind: input, shape index: {}]
  %s4 = inlined_call_operand.vmem [shape: f32[1,82], index: 4, kind: input, shape index: {}]
  %s5 = inlined_call_operand.vmem [shape: f32[82,41], index: 5, kind: input, shape index: {}]
  %s6 = inlined_call_operand.vmem [shape: f32[1,41], index: 6, kind: input, shape index: {}]
  %s7 = inlined_call_operand.vmem [shape: f32[41,20], index: 7, kind: input, shape index: {}]
  %s8 = inlined_call_operand.vmem [shape: f32[1,20], index: 8, kind: input, shape index: {}]
  %s9 = inlined_call_operand.vmem [shape: f32[1,20], index: 9, kind: input, shape index: {}]
  %s10 = inlined_call_operand.<no memory space> [shape: f32[1,1], index: 10, kind: input, shape index: {}]
  %s11 = inlined_call_operand.vmem [shape: f32[8,1], index: 11, kind: output, shape index: {}]
  %s12 = sld [smem:[#allocation0]]
  $region62: #{tpu_custom_call.1} parent=0
    _
  %s14 = ssub.s32 1, %s12
  %s15 = scalar_select 0, %s14, %s12
  %v16 = vstv %s10
  %17 = vst [vmem:[#allocation2] sm:$0x1] %v16
  $region1: #{tpu_custom_call.1} parent=0
    #allocation3 [shape = 'u8[4096]{0}', space=vmem, size = 0x1000, scoped, tag = 'input window, operand 0, single buffered']
    #allocation4 [shape = 's32[1]{0}', space=sflag, size = 0x4, scoped, tag = 'scoped memory for tpu_custom_call.1']
    #allocation5 [shape = 'u8[8192]{0}', space=vmem, size = 0x2000, scoped, tag = 'input window, operand 2, single buffered']
    #allocation6 [shape = 's32[1]{0}', space=sflag, size = 0x4, scoped, tag = 'scoped memory for tpu_custom_call.1']
    %18 = vsyncpa [#allocation4], 0
    %19 = vsyncpa [#allocation6], 0
    // Predicated region
    $region2: #{tpu_custom_call.1} parent=1 // pred_check
      _
    $region3: #{tpu_custom_call.1} parent=1 // pred_check_branch
      %21 = sbr.rel (0) target = $region5
    $region4: #{tpu_custom_call.1} parent=1 // pred_region
      %s23 = ssub.s32 128, 128
      %24 = vsyncadd [#allocation4], %s23
      %s26 = sshll.u32 [#allocation3], 4
      %s27 = int_to_ptr.vmem [resolvable:$true] %s26
      %29 = dma.hbm_to_vmem [thread:$0]  %s0, 128, %s27, [#allocation4]
    $region5: #{tpu_custom_call.1} parent=1 // pred_fallthru
      _
    // Predicated region
    $region6: #{tpu_custom_call.1} parent=1 // pred_check
      _
    $region7: #{tpu_custom_call.1} parent=1 // pred_check_branch
      %31 = sbr.rel (0) target = $region9
    $region8: #{tpu_custom_call.1} parent=1 // pred_region
      _
    $region9: #{tpu_custom_call.1} parent=1 // pred_fallthru
      _
    // Predicated region
    $region10: #{tpu_custom_call.1} parent=1 // pred_check
      _
    $region11: #{tpu_custom_call.1} parent=1 // pred_check_branch
      %33 = sbr.rel (0) target = $region13
    $region12: #{tpu_custom_call.1} parent=1 // pred_region
      %s35 = ssub.s32 256, 256
      %36 = vsyncadd [#allocation6], %s35
      %s37 = sshll.u32 [#allocation5], 4
      %s38 = int_to_ptr.vmem [resolvable:$true] %s37
      %43 = dma.hbm_to_vmem [thread:$0]  %s2, 256, %s38, [#allocation6], 128, 128, 8
    $region13: #{tpu_custom_call.1} parent=1 // pred_fallthru
      _
    // Predicated region
    $region14: #{tpu_custom_call.1} parent=1 // pred_check
      _
    $region15: #{tpu_custom_call.1} parent=1 // pred_check_branch
      %45 = sbr.rel (0) target = $region17
    $region16: #{tpu_custom_call.1} parent=1 // pred_region
      _
    $region17: #{tpu_custom_call.1} parent=1 // pred_fallthru
      _
    // Predicated region
    $region18: #{tpu_custom_call.1} parent=1 // pred_check
      _
    $region19: #{tpu_custom_call.1} parent=1 // pred_check_branch
      %47 = sbr.rel (0) target = $region21
    $region20: #{tpu_custom_call.1} parent=1 // pred_region
      _
    $region21: #{tpu_custom_call.1} parent=1 // pred_fallthru
      _
    // Predicated region
    $region22: #{tpu_custom_call.1} parent=1 // pred_check
      _
    $region23: #{tpu_custom_call.1} parent=1 // pred_check_branch
      %49 = sbr.rel (0) target = $region25
    $region24: #{tpu_custom_call.1} parent=1 // pred_region
      _
    $region25: #{tpu_custom_call.1} parent=1 // pred_fallthru
      _
    // Predicated region
    $region26: #{tpu_custom_call.1} parent=1 // pred_check
      _
    $region27: #{tpu_custom_call.1} parent=1 // pred_check_branch
      %51 = sbr.rel (0) target = $region29
    $region28: #{tpu_custom_call.1} parent=1 // pred_region
      _
    $region29: #{tpu_custom_call.1} parent=1 // pred_fallthru
      _
    // Predicated region
    $region30: #{tpu_custom_call.1} parent=1 // pred_check
      _
    $region31: #{tpu_custom_call.1} parent=1 // pred_check_branch
      %53 = sbr.rel (0) target = $region33
    $region32: #{tpu_custom_call.1} parent=1 // pred_region
      _
    $region33: #{tpu_custom_call.1} parent=1 // pred_fallthru
      _
    // Predicated region
    $region34: #{tpu_custom_call.1} parent=1 // pred_check
      _
    $region35: #{tpu_custom_call.1} parent=1 // pred_check_branch
      %55 = sbr.rel (0) target = $region37
    $region36: #{tpu_custom_call.1} parent=1 // pred_region
      _
    $region37: #{tpu_custom_call.1} parent=1 // pred_fallthru
      _
    // Predicated region
    $region38: #{tpu_custom_call.1} parent=1 // pred_check
      _
    $region39: #{tpu_custom_call.1} parent=1 // pred_check_branch
      %57 = sbr.rel (0) target = $region41
    $region40: #{tpu_custom_call.1} parent=1 // pred_region
      _
    $region41: #{tpu_custom_call.1} parent=1 // pred_fallthru
      _
    // Predicated region
    $region42: #{tpu_custom_call.1} parent=1 // pred_check
      _
    $region43: #{tpu_custom_call.1} parent=1 // pred_check_branch
      %59 = sbr.rel (0) target = $region45
    $region44: #{tpu_custom_call.1} parent=1 // pred_region
      _
    $region45: #{tpu_custom_call.1} parent=1 // pred_fallthru
      _
    // Predicated region
    $region46: #{tpu_custom_call.1} parent=1 // pred_check
      _
    $region47: #{tpu_custom_call.1} parent=1 // pred_check_branch
      %61 = sbr.rel (0) target = $region49
    $region48: #{tpu_custom_call.1} parent=1 // pred_region
      %62 = dma.done [#allocation4], 128
    $region49: #{tpu_custom_call.1} parent=1 // pred_fallthru
      _
    // Predicated region
    $region50: #{tpu_custom_call.1} parent=1 // pred_check
      _
    $region51: #{tpu_custom_call.1} parent=1 // pred_check_branch
      %64 = sbr.rel (0) target = $region53
    $region52: #{tpu_custom_call.1} parent=1 // pred_region
      %65 = dma.done [#allocation6], 256
    $region53: #{tpu_custom_call.1} parent=1 // pred_fallthru
      _
    %v66 = vld [vmem:[#allocation3] sm:$0xff]
    %v67 = vld [vmem:[#allocation5] sm:$0xff]
    %v68 = vld [vmem:[#allocation5 + $0x8] sm:$0x7f]
    %v69 = vld [vmem:[%s1] sm:$0xff]
    %v70 = vld [vmem:[%s1 + $0x8] sm:$0xff]
    %v71 = vld [vmem:[%s3] sm:$0xff]
    %v72 = vld [vmem:[%s3 + $0x8] sm:$0xff]
    %v73 = vld [vmem:[%s3 + $0x10] sm:$0xff]
    %v74 = vld [vmem:[%s3 + $0x18] sm:$0xff]
    %v75 = vld [vmem:[%s3 + $0x20] sm:$0xff]
    %v76 = vld [vmem:[%s3 + $0x28] sm:$0xff]
    %v77 = vld [vmem:[%s3 + $0x30] sm:$0xff]
    %v78 = vld [vmem:[%s3 + $0x38] sm:$0xff]
    %v79 = vld [vmem:[%s3 + $0x40] sm:$0xff]
    %v80 = vld [vmem:[%s3 + $0x48] sm:$0xff]
    %v81 = vld [vmem:[%s3 + $0x50] sm:$0xff]
    %v82 = vld [vmem:[%s3 + $0x58] sm:$0xff]
    %v83 = vld [vmem:[%s3 + $0x60] sm:$0xff]
    %v84 = vld [vmem:[%s3 + $0x68] sm:$0xff]
    %v85 = vld [vmem:[%s3 + $0x70] sm:$0xff]
    %v86 = vld [vmem:[%s3 + $0x78] sm:$0xff]
    %v87 = vld [vmem:[%s3 + $0x80] sm:$0xff]
    %v88 = vld [vmem:[%s3 + $0x88] sm:$0xff]
    %v89 = vld [vmem:[%s3 + $0x90] sm:$0x3f]
    %vm90 = vcmask 179200
    %v92 = vsel %vm90, %v70, 0
    %vm94 = vcmask 1045504
    %v96 = vsel %vm94, %v89, 0
    %98 = vmatprep.subr.mxu0 0.0
    %99 = vmatpush1.msra.mxu0 %v86
    %100 = vmatprep.subr.mxu0 0.0
    %101 = vmatpush1.msra.mxu0 %v85
    %102 = vmatprep.subr.mxu0 0.0
    %103 = vmatpush1.msra.mxu0 %v84
    %104 = vmatprep.subr.mxu0 0.0
    %105 = vmatpush1.msra.mxu0 %v83
    %106 = vmatprep.subr.mxu0 0.0
    %107 = vmatpush1.msra.mxu0 %v82
    %108 = vmatprep.subr.mxu0 0.0
    %109 = vmatpush1.msra.mxu0 %v81
    %110 = vmatprep.subr.mxu0 0.0
    %111 = vmatpush1.msra.mxu0 %v80
    %112 = vmatprep.subr.mxu0 0.0
    %113 = vmatpush1.msra.mxu0 %v79
    %114 = vmatprep.subr.mxu0 0.0
    %115 = vmatpush1.msra.mxu0 %v78
    %116 = vmatprep.subr.mxu0 0.0
    %117 = vmatpush1.msra.mxu0 %v77
    %118 = vmatprep.subr.mxu0 0.0
    %119 = vmatpush1.msra.mxu0 %v76
    %120 = vmatprep.subr.mxu0 0.0
    %121 = vmatpush1.msra.mxu0 %v75
    %122 = vmatprep.subr.mxu0 0.0
    %123 = vmatpush1.msra.mxu0 %v74
    %124 = vmatprep.subr.mxu0 0.0
    %125 = vmatpush1.msra.mxu0 %v73
    %126 = vmatprep.subr.mxu0 0.0
    %127 = vmatpush1.msra.mxu0 %v72
    %128 = vmatprep.subr.mxu0 0.0
    %129 = vmatpush1.msra.mxu0 %v71
    %130 = vmatprep.subr.mxu0 0.0
    %131 = vmatpush2.msra.mxu0 0.0
    %132 = vmatprep.subr.mxu0 0.0
    %133 = vmatpush2.msra.mxu0 0.0
    %134 = vmatprep.subr.mxu0 0.0
    %135 = vmatpush2.msra.mxu0 0.0
    %136 = vmatprep.subr.mxu0 0.0
    %137 = vmatpush2.msra.mxu0 0.0
    %138 = vmatprep.subr.mxu0 0.0
    %139 = vmatpush2.msra.mxu0 0.0
    %140 = vmatprep.subr.mxu0 0.0
    %141 = vmatpush2.msra.mxu0 0.0
    %142 = vmatprep.subr.mxu0 0.0
    %143 = vmatpush2.msra.mxu0 0.0
    %144 = vmatprep.subr.mxu0 0.0
    %145 = vmatpush2.msra.mxu0 0.0
    %146 = vmatprep.subr.mxu0 0.0
    %147 = vmatpush2.msra.mxu0 0.0
    %148 = vmatprep.subr.mxu0 0.0
    %149 = vmatpush2.msra.mxu0 0.0
    %150 = vmatprep.subr.mxu0 0.0
    %151 = vmatpush2.msra.mxu0 0.0
    %152 = vmatprep.subr.mxu0 0.0
    %153 = vmatpush2.msra.mxu0 0.0
    %154 = vmatprep.subr.mxu0 0.0
    %155 = vmatpush2.msra.mxu0 0.0
    %156 = vmatprep.subr.mxu0 0.0
    %157 = vmatpush2.msra.mxu0 %v96
    %158 = vmatprep.subr.mxu0 0.0
    %159 = vmatpush2.msra.mxu0 %v88
    %160 = vmatprep.subr.mxu0 0.0
    %161 = vmatpush2.msra.mxu0 %v87
    %162 = vmatprep.mubr.f32.mxu0 %v92
    %163 = vmatmul.mubr.f32.gmra.mxu0 %v69
    %v164 = vpop.f32.mrf.mxu0
    %v165 = vadd.f32 0.0, %v164
    %v166 = vpop.f32.mrf.mxu0
    %167 = vdwg.mxu0
    %vm168 = vcmask 121856
    %v170 = vsel %vm168, %v66, 0
    %vm172 = vcmask 1046528
    %v174 = vsel %vm172, %v68, 0
    %176 = vmatprep.subr.mxu0 0.0
    %177 = vmatpush1.msra.mxu0 0.0
    %178 = vmatprep.subr.mxu0 0.0
    %179 = vmatpush1.msra.mxu0 0.0
    %180 = vmatprep.subr.mxu0 0.0
    %181 = vmatpush1.msra.mxu0 0.0
    %182 = vmatprep.subr.mxu0 0.0
    %183 = vmatpush1.msra.mxu0 0.0
    %184 = vmatprep.subr.mxu0 0.0
    %185 = vmatpush1.msra.mxu0 0.0
    %186 = vmatprep.subr.mxu0 0.0
    %187 = vmatpush1.msra.mxu0 0.0
    %188 = vmatprep.subr.mxu0 0.0
    %189 = vmatpush1.msra.mxu0 0.0
    %190 = vmatprep.subr.mxu0 0.0
    %191 = vmatpush1.msra.mxu0 0.0
    %192 = vmatprep.subr.mxu0 0.0
    %193 = vmatpush1.msra.mxu0 0.0
    %194 = vmatprep.subr.mxu0 0.0
    %195 = vmatpush1.msra.mxu0 0.0
    %196 = vmatprep.subr.mxu0 0.0
    %197 = vmatpush1.msra.mxu0 0.0
    %198 = vmatprep.subr.mxu0 0.0
    %199 = vmatpush1.msra.mxu0 0.0
    %200 = vmatprep.subr.mxu0 0.0
    %201 = vmatpush1.msra.mxu0 0.0
    %202 = vmatprep.subr.mxu0 0.0
    %203 = vmatpush1.msra.mxu0 0.0
    %204 = vmatprep.subr.mxu0 0.0
    %205 = vmatpush1.msra.mxu0 %v174
    %206 = vmatprep.subr.mxu0 0.0
    %207 = vmatpush1.msra.mxu0 %v67
    %208 = vmatprep.subr.mxu0 0.0
    %209 = vmatpush2.msra.mxu0 0.0
    %210 = vmatprep.subr.mxu0 0.0
    %211 = vmatpush2.msra.mxu0 0.0
    %212 = vmatprep.subr.mxu0 0.0
    %213 = vmatpush2.msra.mxu0 0.0
    %214 = vmatprep.subr.mxu0 0.0
    %215 = vmatpush2.msra.mxu0 0.0
    %216 = vmatprep.subr.mxu0 0.0
    %217 = vmatpush2.msra.mxu0 0.0
    %218 = vmatprep.subr.mxu0 0.0
    %219 = vmatpush2.msra.mxu0 0.0
    %220 = vmatprep.subr.mxu0 0.0
    %221 = vmatpush2.msra.mxu0 0.0
    %222 = vmatprep.subr.mxu0 0.0
    %223 = vmatpush2.msra.mxu0 0.0
    %224 = vmatprep.subr.mxu0 0.0
    %225 = vmatpush2.msra.mxu0 0.0
    %226 = vmatprep.subr.mxu0 0.0
    %227 = vmatpush2.msra.mxu0 0.0
    %228 = vmatprep.subr.mxu0 0.0
    %229 = vmatpush2.msra.mxu0 0.0
    %230 = vmatprep.subr.mxu0 0.0
    %231 = vmatpush2.msra.mxu0 0.0
    %232 = vmatprep.subr.mxu0 0.0
    %233 = vmatpush2.msra.mxu0 0.0
    %234 = vmatprep.subr.mxu0 0.0
    %235 = vmatpush2.msra.mxu0 0.0
    %236 = vmatprep.subr.mxu0 0.0
    %237 = vmatpush2.msra.mxu0 0.0
    %238 = vmatprep.subr.mxu0 0.0
    %239 = vmatpush2.msra.mxu0 0.0
    %240 = vmatprep.mubr.f32.mxu0 0.0
    %241 = vmatmul.mubr.f32.gmra.mxu0 %v170
    %v242 = vpop.f32.mrf.mxu0
    %v243 = vadd.f32 %v165, %v242
    %v244 = vpop.f32.mrf.mxu0
    %245 = vdwg.mxu0
    %v246 = vld [vmem:[%s4] sm:$0x1]
    %v248 = vlaneseq
    %v249 = vshrl.u32 %v248, 7
    %v250 = vsub.s32 0, %v249
    %v251 = vrot.slane %v246, %v250
    %v253 = vadd.f32 %v243, %v251
    %v254 = vmax.f32 %v253, 0.0
    %v255 = vld [vmem:[%s5] sm:$0xff]
    %v256 = vld [vmem:[%s5 + $0x8] sm:$0xff]
    %v257 = vld [vmem:[%s5 + $0x10] sm:$0xff]
    %v258 = vld [vmem:[%s5 + $0x18] sm:$0xff]
    %v259 = vld [vmem:[%s5 + $0x20] sm:$0xff]
    %v260 = vld [vmem:[%s5 + $0x28] sm:$0xff]
    %v261 = vld [vmem:[%s5 + $0x30] sm:$0xff]
    %v262 = vld [vmem:[%s5 + $0x38] sm:$0xff]
    %v263 = vld [vmem:[%s5 + $0x40] sm:$0xff]
    %v264 = vld [vmem:[%s5 + $0x48] sm:$0xff]
    %v265 = vld [vmem:[%s5 + $0x50] sm:$0x3]
    %v266 = vld [vmem:[%s6] sm:$0x1]
    %v268 = vlaneseq
    %v269 = vshrl.u32 %v268, 7
    %v270 = vsub.s32 0, %v269
    %v271 = vrot.slane %v266, %v270
    %vm273 = vcmask 670720
    %v275 = vsel %vm273, %v254, 0
    %vm277 = vcmask 1041408
    %v279 = vsel %vm277, %v265, 0
    %281 = vmatprep.subr.mxu0 0.0
    %282 = vmatpush1.msra.mxu0 0.0
    %283 = vmatprep.subr.mxu0 0.0
    %284 = vmatpush1.msra.mxu0 0.0
    %285 = vmatprep.subr.mxu0 0.0
    %286 = vmatpush1.msra.mxu0 0.0
    %287 = vmatprep.subr.mxu0 0.0
    %288 = vmatpush1.msra.mxu0 0.0
    %289 = vmatprep.subr.mxu0 0.0
    %290 = vmatpush1.msra.mxu0 0.0
    %291 = vmatprep.subr.mxu0 0.0
    %292 = vmatpush1.msra.mxu0 %v279
    %293 = vmatprep.subr.mxu0 0.0
    %294 = vmatpush1.msra.mxu0 %v264
    %295 = vmatprep.subr.mxu0 0.0
    %296 = vmatpush1.msra.mxu0 %v263
    %297 = vmatprep.subr.mxu0 0.0
    %298 = vmatpush1.msra.mxu0 %v262
    %299 = vmatprep.subr.mxu0 0.0
    %300 = vmatpush1.msra.mxu0 %v261
    %301 = vmatprep.subr.mxu0 0.0
    %302 = vmatpush1.msra.mxu0 %v260
    %303 = vmatprep.subr.mxu0 0.0
    %304 = vmatpush1.msra.mxu0 %v259
    %305 = vmatprep.subr.mxu0 0.0
    %306 = vmatpush1.msra.mxu0 %v258
    %307 = vmatprep.subr.mxu0 0.0
    %308 = vmatpush1.msra.mxu0 %v257
    %309 = vmatprep.subr.mxu0 0.0
    %310 = vmatpush1.msra.mxu0 %v256
    %311 = vmatprep.subr.mxu0 0.0
    %312 = vmatpush1.msra.mxu0 %v255
    %313 = vmatprep.subr.mxu0 0.0
    %314 = vmatpush2.msra.mxu0 0.0
    %315 = vmatprep.subr.mxu0 0.0
    %316 = vmatpush2.msra.mxu0 0.0
    %317 = vmatprep.subr.mxu0 0.0
    %318 = vmatpush2.msra.mxu0 0.0
    %319 = vmatprep.subr.mxu0 0.0
    %320 = vmatpush2.msra.mxu0 0.0
    %321 = vmatprep.subr.mxu0 0.0
    %322 = vmatpush2.msra.mxu0 0.0
    %323 = vmatprep.subr.mxu0 0.0
    %324 = vmatpush2.msra.mxu0 0.0
    %325 = vmatprep.subr.mxu0 0.0
    %326 = vmatpush2.msra.mxu0 0.0
    %327 = vmatprep.subr.mxu0 0.0
    %328 = vmatpush2.msra.mxu0 0.0
    %329 = vmatprep.subr.mxu0 0.0
    %330 = vmatpush2.msra.mxu0 0.0
    %331 = vmatprep.subr.mxu0 0.0
    %332 = vmatpush2.msra.mxu0 0.0
    %333 = vmatprep.subr.mxu0 0.0
    %334 = vmatpush2.msra.mxu0 0.0
    %335 = vmatprep.subr.mxu0 0.0
    %336 = vmatpush2.msra.mxu0 0.0
    %337 = vmatprep.subr.mxu0 0.0
    %338 = vmatpush2.msra.mxu0 0.0
    %339 = vmatprep.subr.mxu0 0.0
    %340 = vmatpush2.msra.mxu0 0.0
    %341 = vmatprep.subr.mxu0 0.0
    %342 = vmatpush2.msra.mxu0 0.0
    %343 = vmatprep.subr.mxu0 0.0
    %344 = vmatpush2.msra.mxu0 0.0
    %345 = vmatprep.mubr.f32.mxu0 0.0
    %346 = vmatmul.mubr.f32.gmra.mxu0 %v275
    %v347 = vpop.f32.mrf.mxu0
    %v348 = vadd.f32 %v271, %v347
    %v349 = vpop.f32.mrf.mxu0
    %350 = vdwg.mxu0
    %v351 = vmax.f32 %v348, 0.0
    %v352 = vld [vmem:[%s7] sm:$0xff]
    %v353 = vld [vmem:[%s7 + $0x8] sm:$0xff]
    %v354 = vld [vmem:[%s7 + $0x10] sm:$0xff]
    %v355 = vld [vmem:[%s7 + $0x18] sm:$0xff]
    %v356 = vld [vmem:[%s7 + $0x20] sm:$0xff]
    %v357 = vld [vmem:[%s7 + $0x28] sm:$0x1]
    %v358 = vld [vmem:[%s8] sm:$0x1]
    %v360 = vlaneseq
    %v361 = vshrl.u32 %v360, 7
    %v362 = vsub.s32 0, %v361
    %v363 = vrot.slane %v358, %v362
    %vm365 = vcmask 334848
    %v367 = vsel %vm365, %v351, 0
    %vm369 = vcmask 1040384
    %v371 = vsel %vm369, %v357, 0
    %373 = vmatprep.subr.mxu0 0.0
    %374 = vmatpush1.msra.mxu0 0.0
    %375 = vmatprep.subr.mxu0 0.0
    %376 = vmatpush1.msra.mxu0 0.0
    %377 = vmatprep.subr.mxu0 0.0
    %378 = vmatpush1.msra.mxu0 0.0
    %379 = vmatprep.subr.mxu0 0.0
    %380 = vmatpush1.msra.mxu0 0.0
    %381 = vmatprep.subr.mxu0 0.0
    %382 = vmatpush1.msra.mxu0 0.0
    %383 = vmatprep.subr.mxu0 0.0
    %384 = vmatpush1.msra.mxu0 0.0
    %385 = vmatprep.subr.mxu0 0.0
    %386 = vmatpush1.msra.mxu0 0.0
    %387 = vmatprep.subr.mxu0 0.0
    %388 = vmatpush1.msra.mxu0 0.0
    %389 = vmatprep.subr.mxu0 0.0
    %390 = vmatpush1.msra.mxu0 0.0
    %391 = vmatprep.subr.mxu0 0.0
    %392 = vmatpush1.msra.mxu0 0.0
    %393 = vmatprep.subr.mxu0 0.0
    %394 = vmatpush1.msra.mxu0 %v371
    %395 = vmatprep.subr.mxu0 0.0
    %396 = vmatpush1.msra.mxu0 %v356
    %397 = vmatprep.subr.mxu0 0.0
    %398 = vmatpush1.msra.mxu0 %v355
    %399 = vmatprep.subr.mxu0 0.0
    %400 = vmatpush1.msra.mxu0 %v354
    %401 = vmatprep.subr.mxu0 0.0
    %402 = vmatpush1.msra.mxu0 %v353
    %403 = vmatprep.subr.mxu0 0.0
    %404 = vmatpush1.msra.mxu0 %v352
    %405 = vmatprep.subr.mxu0 0.0
    %406 = vmatpush2.msra.mxu0 0.0
    %407 = vmatprep.subr.mxu0 0.0
    %408 = vmatpush2.msra.mxu0 0.0
    %409 = vmatprep.subr.mxu0 0.0
    %410 = vmatpush2.msra.mxu0 0.0
    %411 = vmatprep.subr.mxu0 0.0
    %412 = vmatpush2.msra.mxu0 0.0
    %413 = vmatprep.subr.mxu0 0.0
    %414 = vmatpush2.msra.mxu0 0.0
    %415 = vmatprep.subr.mxu0 0.0
    %416 = vmatpush2.msra.mxu0 0.0
    %417 = vmatprep.subr.mxu0 0.0
    %418 = vmatpush2.msra.mxu0 0.0
    %419 = vmatprep.subr.mxu0 0.0
    %420 = vmatpush2.msra.mxu0 0.0
    %421 = vmatprep.subr.mxu0 0.0
    %422 = vmatpush2.msra.mxu0 0.0
    %423 = vmatprep.subr.mxu0 0.0
    %424 = vmatpush2.msra.mxu0 0.0
    %425 = vmatprep.subr.mxu0 0.0
    %426 = vmatpush2.msra.mxu0 0.0
    %427 = vmatprep.subr.mxu0 0.0
    %428 = vmatpush2.msra.mxu0 0.0
    %429 = vmatprep.subr.mxu0 0.0
    %430 = vmatpush2.msra.mxu0 0.0
    %431 = vmatprep.subr.mxu0 0.0
    %432 = vmatpush2.msra.mxu0 0.0
    %433 = vmatprep.subr.mxu0 0.0
    %434 = vmatpush2.msra.mxu0 0.0
    %435 = vmatprep.subr.mxu0 0.0
    %436 = vmatpush2.msra.mxu0 0.0
    %437 = vmatprep.mubr.f32.mxu0 0.0
    %438 = vmatmul.mubr.f32.gmra.mxu0 %v367
    %v439 = vpop.f32.mrf.mxu0
    %v440 = vadd.f32 %v363, %v439
    %v441 = vpop.f32.mrf.mxu0
    %442 = vdwg.mxu0
    %v443 = vmax.f32 %v440, 0.0
    %v444 = vld [vmem:[%s9] sm:$0x1]
    %v446 = vlaneseq
    %v447 = vshrl.u32 %v446, 7
    %v448 = vsub.s32 0, %v447
    %v449 = vrot.slane %v444, %v448
    %v451 = vmul.f32 %v443, %v449
    %vm452 = vcmask 162816
    %v453 = vsel %vm452, %v451, 0.0
    %454 = vadd.xlane.f32.xlu0 %v453
    %v455 = vpop.xlane.xlu0 %454
    %v456 = vld [vmem:[#allocation2] sm:$0x1]
    %v458 = vlaneseq
    %v459 = vshrl.u32 %v458, 7
    %v460 = vsub.s32 0, %v459
    %v461 = vrot.slane %v456, %v460
    %v463 = vadd.f32 %v455, %v461
    %v464 = vsub.f32 0.0, %v463
    %v465 = vmul.f32 %v464, 1.442695
    %v466 = vpow.pop %v465
    %v467 = vadd.f32 %v466, 1.0
    %v468 = vrcp.pop %v467
    %v469 = vmul.f32 1.0, %v468
    %vm470 = vcmask 7168
    %471 = vst.msk [vmem:[%s11] sm:$0xff] %vm470, %v469
    // Predicated region
    $region54: #{tpu_custom_call.1} parent=1 // pred_check
      _
    $region55: #{tpu_custom_call.1} parent=1 // pred_check_branch
      %473 = sbr.rel (0) target = $region57
    $region56: #{tpu_custom_call.1} parent=1 // pred_region
      _
    $region57: #{tpu_custom_call.1} parent=1 // pred_fallthru
      _
    // Predicated region
    $region58: #{tpu_custom_call.1} parent=1 // pred_check
      _
    $region59: #{tpu_custom_call.1} parent=1 // pred_check_branch
      %475 = sbr.rel (0) target = $region61
    $region60: #{tpu_custom_call.1} parent=1 // pred_region
      _
    $region61: #{tpu_custom_call.1} parent=1 // pred_fallthru
      _
    %476 = vsyncpa [#allocation4], 1
    %477 = vsyncpa [#allocation6], 1

</llo_original>
